<compile_context>
chip_gen: v6e
topology: v6e:2x2x1
jax: 0.10.0
libtpu: 0.0.40
codegen_flags: <defaults>
</compile_context>

<pallas_src>
import functools

import jax
import jax.numpy as jnp
from jax import lax
from jax.experimental import pallas as pl
from jax.experimental.pallas import tpu as pltpu


# --------------------------------------------------------------------------
# Kernel 1: pairwise squared Euclidean distances of X, row-tiled.
# --------------------------------------------------------------------------
def _pairwise_sq_dists_kernel(xr_ref, x_ref, sq_row_ref, d_ref):
    a = xr_ref[...]                                            # [TM, D]
    x = x_ref[...]                                             # [N,  D]
    # Gram block A @ X^T (contract the feature axis of both operands).
    g = lax.dot_general(a, x, (((1,), (1,)), ((), ())),
                        preferred_element_type=jnp.float32)    # [TM, N]
    sq_a = jnp.sum(a * a, axis=1, keepdims=True)               # [TM, 1]
    d_ref[...] = jnp.maximum(sq_a + sq_row_ref[...] - 2.0 * g, 0.0)


def _pick_row_tile(n):
    for t in (512, 256, 128):
        if n % t == 0:
            return t
    return n                      # small problems: single whole-array block


def _pairwise_sq_dists(x):
    n, d = x.shape
    tm = _pick_row_tile(n)
    sq_row = jnp.sum(x * x, axis=1)[None, :]                   # [1, N] (tiny JAX op)
    return pl.pallas_call(
        _pairwise_sq_dists_kernel,
        out_shape=jax.ShapeDtypeStruct((n, n), jnp.float32),
        grid_spec=pltpu.PrefetchScalarGridSpec(
            num_scalar_prefetch=0,
            grid=(n // tm,),
            in_specs=[
                pl.BlockSpec((tm, d), lambda i: (i, 0)),
                pl.BlockSpec((n, d), lambda i: (0, 0)),
                pl.BlockSpec((1, n), lambda i: (0, 0)),
            ],
            out_specs=pl.BlockSpec((tm, n), lambda i: (i, 0)),
        ),
        compiler_params=pltpu.CompilerParams(
            dimension_semantics=("parallel",)),
    )(x, x, sq_row)


# --------------------------------------------------------------------------
# Kernel 2: full t-SNE gradient-descent loop + final min-max normalization.
# Single invocation (no grid); all iterations run in an in-kernel fori_loop;
# the embedding/velocity state is lane-dense [n_component, N].
# --------------------------------------------------------------------------
def _tsne_optimize_kernel(p_ref, y0_ref, out_ref, *, n_iter, lr, momentum,
                          exaggeration, exag_iters):
    p = p_ref[...]                                             # [N, N] f32
    n = p.shape[0]

    def step(it, carry):
        y, vel = carry                                         # [C, N] each
        exag = jnp.where(it < exag_iters, jnp.float32(exaggeration),
                         jnp.float32(1.0))

        # Low-dim pairwise squared distances. No diagonal masking: the j==i
        # gradient term cancels identically, and the Q normalizer removes the
        # N diagonal entries of `num` (each ~1) explicitly.
        yc = y.T                                               # [N, C] (tiny)
        g = lax.dot_general(yc, yc, (((1,), (1,)), ((), ())),
                            preferred_element_type=jnp.float32)   # [N, N]
        sq_col = jnp.sum(yc * yc, axis=1, keepdims=True)       # [N, 1]
        sq_row = jnp.sum(y * y, axis=0, keepdims=True)         # [1, N]
        dist = jnp.maximum(sq_col + sq_row - 2.0 * g, 0.0)

        # Student-t kernel via EUP approx reciprocal (free VLIW slot).
        num = pl.reciprocal(1.0 + dist, approx=True)           # [N, N]
        s = jnp.maximum(jnp.sum(num) - jnp.float32(n), 1e-12)  # exclude diag
        inv_s = 1.0 / s                                        # scalar

        # W = (exag*P - Q) * num, Q = num / S. KL gradient in transposed
        # layout: grad = 4 * (colsum(W) * y - y @ W)  (W is symmetric).
        w = (exag * p - num * inv_s) * num                     # [N, N]
        w_sum = jnp.sum(w, axis=0, keepdims=True)              # [1, N]
        yw = lax.dot_general(y, w, (((1,), (0,)), ((), ())),
                             preferred_element_type=jnp.float32)  # [C, N]
        grad = 4.0 * (w_sum * y - yw)

        vel = momentum * vel - lr * grad
        return y + vel, vel

    y0 = y0_ref[...]
    y_fin, _ = lax.fori_loop(0, n_iter, step, (y0, jnp.zeros_like(y0)))

    # Per-component min-max normalization (lane-dense axis).
    y_min = jnp.min(y_fin, axis=1, keepdims=True)              # [C, 1]
    y_max = jnp.max(y_fin, axis=1, keepdims=True)              # [C, 1]
    out_ref[...] = (y_fin - y_min) / jnp.maximum(y_max - y_min, 1e-12)


# --------------------------------------------------------------------------
# Plain-JAX glue: perplexity binary search -> symmetric joint probabilities P.
# --------------------------------------------------------------------------
def _compute_joint_probabilities(sq_dists, perplexity, n_steps=50):
    n = sq_dists.shape[0]
    target_entropy = jnp.log(jnp.float32(perplexity))
    eye = jnp.eye(n, dtype=bool)

    def row_stats(beta):
        p = jnp.exp(-sq_dists * beta[:, None])
        p = jnp.where(eye, 0.0, p)
        sum_p = jnp.maximum(jnp.sum(p, axis=1), 1e-12)
        h = jnp.log(sum_p) + beta * jnp.sum(sq_dists * p, axis=1) / sum_p
        return p / sum_p[:, None], h

    def body(_, state):
        beta, beta_min, beta_max = state
        _, h = row_stats(beta)
        diff = h - target_entropy
        beta_min = jnp.where(diff > 0, beta, beta_min)
        beta_max = jnp.where(diff > 0, beta_max, beta)
        new_beta = jnp.where(
            diff > 0,
            jnp.where(jnp.isposinf(beta_max), beta * 2.0,
                      (beta + beta_max) / 2.0),
            jnp.where(jnp.isneginf(beta_min), beta / 2.0,
                      (beta + beta_min) / 2.0),
        )
        return new_beta, beta_min, beta_max

    beta0 = jnp.ones((n,), jnp.float32)
    state0 = (beta0,
              jnp.full((n,), -jnp.inf, jnp.float32),
              jnp.full((n,), jnp.inf, jnp.float32))
    beta, _, _ = lax.fori_loop(0, n_steps, body, state0)
    p_cond, _ = row_stats(beta)
    p = (p_cond + p_cond.T) / (2.0 * n)
    return jnp.maximum(p, 1e-12)


# --------------------------------------------------------------------------
# Wrapper: TSNE.forward equivalent -> min-max normalized embedding [N, 2].
# --------------------------------------------------------------------------
def tsne_forward(X, *, n_component=2, perplexity=15.0, n_iter=300,
                 lr=100.0, momentum=0.8, exaggeration=4.0, exag_iters=100,
                 random_state=0):
    # NOTE: this is a vanilla momentum optimizer (no sklearn "gains"
    # adaptation); it reproduces the forward-pass semantics of producing a
    # t-SNE embedding that is then min-max normalized, not sklearn bit-for-bit.
    X = X.astype(jnp.float32)
    N, _ = X.shape

    # 1) pairwise squared distances (Pallas, row-tiled / megacore-parallel).
    sq_dists = _pairwise_sq_dists(X)

    # 2) P matrix via per-row perplexity binary search (JAX glue).
    P = _compute_joint_probabilities(sq_dists, perplexity)

    # 3) init='random' embedding, deterministic from random_state,
    #    stored lane-dense as [n_component, N].
    key = jax.random.PRNGKey(random_state)
    y0t = 1e-4 * jax.random.normal(key, (n_component, N), dtype=jnp.float32)

    # 4) gradient-descent loop + min-max normalization: ONE pallas_call,
    #    all n_iter steps inside an in-kernel fori_loop (no per-step grid
    #    overhead, no double-buffering of the resident P matrix).
    kernel = functools.partial(_tsne_optimize_kernel, n_iter=n_iter, lr=lr,
                               momentum=momentum, exaggeration=exaggeration,
                               exag_iters=exag_iters)
    yt_norm = pl.pallas_call(
        kernel,
        out_shape=jax.ShapeDtypeStruct((n_component, N), jnp.float32),
    )(P, y0t)
    return yt_norm.T                                           # [N, n_component]


if __name__ == "__main__":
    # Small, deterministic synthetic input: 64 samples x 32 features with a
    # bit of cluster structure so t-SNE has something to do.
    key = jax.random.PRNGKey(0)
    k1, k2 = jax.random.split(key)
    N, D = 64, 32
    centers = jax.random.normal(k1, (4, D), dtype=jnp.float32) * 4.0
    labels = jnp.arange(N) % 4
    X = centers[labels] + 0.5 * jax.random.normal(k2, (N, D), dtype=jnp.float32)

    X_norm = tsne_forward(X, n_component=2, perplexity=15.0, n_iter=300,
                          random_state=0)
    X_norm = jax.block_until_ready(X_norm)

    assert X_norm.shape == (N, 2)
    assert bool(jnp.all(jnp.isfinite(X_norm)))
    assert float(jnp.min(X_norm)) >= -1e-5 and float(jnp.max(X_norm)) <= 1.0 + 1e-5
    print("KERNEL_OK")
</pallas_src>

<mosaic_0001>
module attributes {stable_mosaic.version = 11 : i64} {
  func.func @_pairwise_sq_dists_kernel(%arg0: i32, %arg1: memref<64x32xf32, #tpu.memory_space<vmem>>, %arg2: memref<64x32xf32, #tpu.memory_space<vmem>>, %arg3: memref<1x64xf32, #tpu.memory_space<vmem>>, %arg4: memref<64x64xf32, #tpu.memory_space<vmem>>) attributes {dimension_semantics = [#tpu.dimension_semantics<parallel>], iteration_bounds = array<i64: 1>, scalar_prefetch = 0 : i64, scratch_operands = 0 : i64, tpu.core_type = #tpu.core_type<tc>, window_params = [{transform_indices = @transform_0, window_bounds = array<i64: 64, 32>}, {pipeline_mode = #tpu.pipeline_mode<synchronous>, transform_indices = @transform_1, window_bounds = array<i64: 64, 32>}, {pipeline_mode = #tpu.pipeline_mode<synchronous>, transform_indices = @transform_2, window_bounds = array<i64: 1, 64>}, {transform_indices = @transform_3, window_bounds = array<i64: 64, 64>}]} {
    %c0 = arith.constant 0 : index
    %c0_0 = arith.constant 0 : index
    %0 = vector.load %arg1[%c0, %c0_0] : memref<64x32xf32, #tpu.memory_space<vmem>>, vector<64x32xf32>
    %c0_1 = arith.constant 0 : index
    %c0_2 = arith.constant 0 : index
    %1 = vector.load %arg2[%c0_1, %c0_2] : memref<64x32xf32, #tpu.memory_space<vmem>>, vector<64x32xf32>
    %cst = arith.constant dense<0.000000e+00> : vector<64x64xf32>
    %2 = tpu.matmul %0, %1, %cst {dimension_numbers = #tpu.dot_dimension_numbers<[1], [1], [0], [0], [0, 0, 1, 0], [], []>} : vector<64x32xf32>, vector<64x32xf32>, vector<64x64xf32> -> vector<64x64xf32>
    %3 = arith.mulf %0, %0 : vector<64x32xf32>
    %cst_3 = arith.constant dense<0.000000e+00> : vector<64xf32>
    %4 = vector.multi_reduction <add>, %3, %cst_3 [1] : vector<64x32xf32> to vector<64xf32>
    %5 = vector.shape_cast %4 : vector<64xf32> to vector<64x1xf32>
    %c0_4 = arith.constant 0 : index
    %c0_5 = arith.constant 0 : index
    %6 = vector.load %arg3[%c0_4, %c0_5] : memref<1x64xf32, #tpu.memory_space<vmem>>, vector<1x64xf32>
    %7 = vector.broadcast %5 : vector<64x1xf32> to vector<64x64xf32>
    %8 = vector.broadcast %6 : vector<1x64xf32> to vector<64x64xf32>
    %9 = arith.addf %7, %8 : vector<64x64xf32>
    %cst_6 = arith.constant 2.000000e+00 : f32
    %10 = vector.broadcast %cst_6 : f32 to vector<64x64xf32>
    %11 = arith.mulf %10, %2 : vector<64x64xf32>
    %12 = arith.subf %9, %11 : vector<64x64xf32>
    %cst_7 = arith.constant 0.000000e+00 : f32
    %13 = vector.broadcast %cst_7 : f32 to vector<64x64xf32>
    %14 = arith.maximumf %12, %13 : vector<64x64xf32>
    %c0_8 = arith.constant 0 : index
    %c0_9 = arith.constant 0 : index
    %15 = vector.load %arg4[%c0_8, %c0_9] : memref<64x64xf32, #tpu.memory_space<vmem>>, vector<64x64xf32>
    tpu.vector_store %arg4[%c0_8, %c0_9], %14 {strides = array<i32>} : memref<64x64xf32, #tpu.memory_space<vmem>>, vector<64x64xf32>,
    return
  }
  func.func @transform_0(%arg0: i32) -> (i32, i32) {
    %c0_i32 = arith.constant 0 : i32
    %c0_i32_0 = arith.constant 0 : i32
    return %arg0, %c0_i32 : i32, i32
  }
  func.func @transform_1(%arg0: i32) -> (i32, i32) {
    %c0_i32 = arith.constant 0 : i32
    %c0_i32_0 = arith.constant 0 : i32
    %c0_i32_1 = arith.constant 0 : i32
    return %c0_i32, %c0_i32_0 : i32, i32
  }
  func.func @transform_2(%arg0: i32) -> (i32, i32) {
    %c0_i32 = arith.constant 0 : i32
    %c0_i32_0 = arith.constant 0 : i32
    %c0_i32_1 = arith.constant 0 : i32
    return %c0_i32, %c0_i32_0 : i32, i32
  }
  func.func @transform_3(%arg0: i32) -> (i32, i32) {
    %c0_i32 = arith.constant 0 : i32
    %c0_i32_0 = arith.constant 0 : i32
    return %arg0, %c0_i32 : i32, i32
  }
}

</mosaic_0001>

<llo_original>
// kernel: tpu_custom_call.1
$region0: #{tpu_custom_call.1}
  #allocation0 [shape = 'u32[]', space=smem, size = 0x4, offset = 0x4, fixed_abs, tag = 'smem constant byte address 0x4 - core index']
  #allocation1 [shape = 'u32[144,128]{1,0:T(1,128)}', space=vmem, size = 0x12000, scoped, tag = 'internal scratch']
  %s0 = inlined_call_operand.vmem [shape: f32[64,32], index: 0, kind: input, shape index: {}]
  %s1 = inlined_call_operand.vmem [shape: f32[64,32], index: 1, kind: input, shape index: {}]
  %s2 = inlined_call_operand.vmem [shape: f32[1,64], index: 2, kind: input, shape index: {}]
  %s3 = inlined_call_operand.hbm [shape: f32[64,64], index: 3, kind: output, shape index: {}]
  %s4 = sld [smem:[#allocation0]]
  $region22: #{tpu_custom_call.1} parent=0
    _
  %s6 = ssub.s32 1, %s4
  %s7 = scalar_select 0, %s6, %s4
  $region1: #{tpu_custom_call.1} parent=0
    #allocation2 [shape = 'u8[32768]{0}', space=vmem, size = 0x8000, scoped, tag = 'output window, operand 0, single buffered']
    #allocation3 [shape = 's32[1]{0}', space=sflag, size = 0x4, scoped, tag = 'scoped memory for tpu_custom_call.1']
    %8 = vsyncpa [#allocation3], 0
    // Predicated region
    $region2: #{tpu_custom_call.1} parent=1 // pred_check
      _
    $region3: #{tpu_custom_call.1} parent=1 // pred_check_branch
      %10 = sbr.rel (0) target = $region5
    $region4: #{tpu_custom_call.1} parent=1 // pred_region
      _
    $region5: #{tpu_custom_call.1} parent=1 // pred_fallthru
      _
    // Predicated region
    $region6: #{tpu_custom_call.1} parent=1 // pred_check
      _
    $region7: #{tpu_custom_call.1} parent=1 // pred_check_branch
      %12 = sbr.rel (0) target = $region9
    $region8: #{tpu_custom_call.1} parent=1 // pred_region
      _
    $region9: #{tpu_custom_call.1} parent=1 // pred_fallthru
      _
    // Predicated region
    $region10: #{tpu_custom_call.1} parent=1 // pred_check
      _
    $region11: #{tpu_custom_call.1} parent=1 // pred_check_branch
      %14 = sbr.rel (0) target = $region13
    $region12: #{tpu_custom_call.1} parent=1 // pred_region
      _
    $region13: #{tpu_custom_call.1} parent=1 // pred_fallthru
      _
    %v15 = vld [vmem:[%s0] sm:$0xff]
    %v16 = vld [vmem:[%s0 + $0x8] sm:$0xff]
    %v17 = vld [vmem:[%s0 + $0x10] sm:$0xff]
    %v18 = vld [vmem:[%s0 + $0x18] sm:$0xff]
    %v19 = vld [vmem:[%s0 + $0x20] sm:$0xff]
    %v20 = vld [vmem:[%s0 + $0x28] sm:$0xff]
    %v21 = vld [vmem:[%s0 + $0x30] sm:$0xff]
    %v22 = vld [vmem:[%s0 + $0x38] sm:$0xff]
    %v23 = vld [vmem:[%s1] sm:$0xff]
    %v24 = vld [vmem:[%s1 + $0x8] sm:$0xff]
    %v25 = vld [vmem:[%s1 + $0x10] sm:$0xff]
    %v26 = vld [vmem:[%s1 + $0x18] sm:$0xff]
    %v27 = vld [vmem:[%s1 + $0x20] sm:$0xff]
    %v28 = vld [vmem:[%s1 + $0x28] sm:$0xff]
    %v29 = vld [vmem:[%s1 + $0x30] sm:$0xff]
    %v30 = vld [vmem:[%s1 + $0x38] sm:$0xff]
    %vm31 = vcmask 261120
    %v33 = vsel %vm31, %v15, 0
    %v36 = vsel %vm31, %v16, 0
    %v39 = vsel %vm31, %v17, 0
    %v42 = vsel %vm31, %v18, 0
    %v45 = vsel %vm31, %v19, 0
    %v48 = vsel %vm31, %v20, 0
    %v51 = vsel %vm31, %v21, 0
    %v54 = vsel %vm31, %v22, 0
    %v57 = vsel %vm31, %v23, 0
    %v60 = vsel %vm31, %v24, 0
    %v63 = vsel %vm31, %v25, 0
    %v66 = vsel %vm31, %v26, 0
    %v69 = vsel %vm31, %v27, 0
    %v72 = vsel %vm31, %v28, 0
    %v75 = vsel %vm31, %v29, 0
    %v78 = vsel %vm31, %v30, 0
    %80 = vmatprep.subr.mxu0 0.0
    %81 = vmatpush1.xpose.msra.mxu0 0.0
    %82 = vmatprep.subr.mxu0 0.0
    %83 = vmatpush1.xpose.msra.mxu0 0.0
    %84 = vmatprep.subr.mxu0 0.0
    %85 = vmatpush1.xpose.msra.mxu0 0.0
    %86 = vmatprep.subr.mxu0 0.0
    %87 = vmatpush1.xpose.msra.mxu0 0.0
    %88 = vmatprep.subr.mxu0 0.0
    %89 = vmatpush1.xpose.msra.mxu0 0.0
    %90 = vmatprep.subr.mxu0 0.0
    %91 = vmatpush1.xpose.msra.mxu0 0.0
    %92 = vmatprep.subr.mxu0 0.0
    %93 = vmatpush1.xpose.msra.mxu0 0.0
    %94 = vmatprep.subr.mxu0 0.0
    %95 = vmatpush1.xpose.msra.mxu0 0.0
    %96 = vmatprep.subr.mxu0 0.0
    %97 = vmatpush1.xpose.msra.mxu0 %v78
    %98 = vmatprep.subr.mxu0 0.0
    %99 = vmatpush1.xpose.msra.mxu0 %v75
    %100 = vmatprep.subr.mxu0 0.0
    %101 = vmatpush1.xpose.msra.mxu0 %v72
    %102 = vmatprep.subr.mxu0 0.0
    %103 = vmatpush1.xpose.msra.mxu0 %v69
    %104 = vmatprep.subr.mxu0 0.0
    %105 = vmatpush1.xpose.msra.mxu0 %v66
    %106 = vmatprep.subr.mxu0 0.0
    %107 = vmatpush1.xpose.msra.mxu0 %v63
    %108 = vmatprep.subr.mxu0 0.0
    %109 = vmatpush1.xpose.msra.mxu0 %v60
    %110 = vmatprep.subr.mxu0 0.0
    %111 = vmatpush1.xpose.msra.mxu0 %v57
    %112 = vmatprep.subr.mxu0 0.0
    %113 = vmatpush2.xpose.msra.mxu0 0.0
    %114 = vmatprep.subr.mxu0 0.0
    %115 = vmatpush2.xpose.msra.mxu0 0.0
    %116 = vmatprep.subr.mxu0 0.0
    %117 = vmatpush2.xpose.msra.mxu0 0.0
    %118 = vmatprep.subr.mxu0 0.0
    %119 = vmatpush2.xpose.msra.mxu0 0.0
    %120 = vmatprep.subr.mxu0 0.0
    %121 = vmatpush2.xpose.msra.mxu0 0.0
    %122 = vmatprep.subr.mxu0 0.0
    %123 = vmatpush2.xpose.msra.mxu0 0.0
    %124 = vmatprep.subr.mxu0 0.0
    %125 = vmatpush2.xpose.msra.mxu0 0.0
    %126 = vmatprep.subr.mxu0 0.0
    %127 = vmatpush2.xpose.msra.mxu0 0.0
    %128 = vmatprep.subr.mxu0 0.0
    %129 = vmatpush2.xpose.msra.mxu0 0.0
    %130 = vmatprep.subr.mxu0 0.0
    %131 = vmatpush2.xpose.msra.mxu0 0.0
    %132 = vmatprep.subr.mxu0 0.0
    %133 = vmatpush2.xpose.msra.mxu0 0.0
    %134 = vmatprep.subr.mxu0 0.0
    %135 = vmatpush2.xpose.msra.mxu0 0.0
    %136 = vmatprep.subr.mxu0 0.0
    %137 = vmatpush2.xpose.msra.mxu0 0.0
    %138 = vmatprep.subr.mxu0 0.0
    %139 = vmatpush2.xpose.msra.mxu0 0.0
    %140 = vmatprep.subr.mxu0 0.0
    %141 = vmatpush2.xpose.msra.mxu0 0.0
    %142 = vmatprep.subr.mxu0 0.0
    %143 = vmatpush2.xpose.msra.mxu0 0.0
    %144 = vmatprep.mubr.f32.mxu0 0.0
    %145 = vmatmul.mubr.f32.gmra.mxu0 %v33
    %v146 = vpop.f32.mrf.mxu0
    %v147 = vadd.f32 0.0, %v146
    %v148 = vpop.f32.mrf.mxu0
    %149 = vmatprep.mubr.f32.mxu0 0.0
    %150 = vmatmul.mubr.f32.gmra.mxu0 %v36
    %v151 = vpop.f32.mrf.mxu0
    %v152 = vadd.f32 0.0, %v151
    %v153 = vpop.f32.mrf.mxu0
    %154 = vmatprep.mubr.f32.mxu0 0.0
    %155 = vmatmul.mubr.f32.gmra.mxu0 %v39
    %v156 = vpop.f32.mrf.mxu0
    %v157 = vadd.f32 0.0, %v156
    %v158 = vpop.f32.mrf.mxu0
    %159 = vmatprep.mubr.f32.mxu0 0.0
    %160 = vmatmul.mubr.f32.gmra.mxu0 %v42
    %v161 = vpop.f32.mrf.mxu0
    %v162 = vadd.f32 0.0, %v161
    %v163 = vpop.f32.mrf.mxu0
    %164 = vmatprep.mubr.f32.mxu0 0.0
    %165 = vmatmul.mubr.f32.gmra.mxu0 %v45
    %v166 = vpop.f32.mrf.mxu0
    %v167 = vadd.f32 0.0, %v166
    %v168 = vpop.f32.mrf.mxu0
    %169 = vmatprep.mubr.f32.mxu0 0.0
    %170 = vmatmul.mubr.f32.gmra.mxu0 %v48
    %v171 = vpop.f32.mrf.mxu0
    %v172 = vadd.f32 0.0, %v171
    %v173 = vpop.f32.mrf.mxu0
    %174 = vmatprep.mubr.f32.mxu0 0.0
    %175 = vmatmul.mubr.f32.gmra.mxu0 %v51
    %v176 = vpop.f32.mrf.mxu0
    %v177 = vadd.f32 0.0, %v176
    %v178 = vpop.f32.mrf.mxu0
    %179 = vmatprep.mubr.f32.mxu0 0.0
    %180 = vmatmul.mubr.f32.gmra.mxu0 %v54
    %v181 = vpop.f32.mrf.mxu0
    %v182 = vadd.f32 0.0, %v181
    %v183 = vpop.f32.mrf.mxu0
    %184 = vdwg.mxu0
    %v185 = vmul.f32 %v15, %v15
    %v186 = vmul.f32 %v16, %v16
    %v187 = vmul.f32 %v17, %v17
    %v188 = vmul.f32 %v18, %v18
    %v189 = vmul.f32 %v19, %v19
    %v190 = vmul.f32 %v20, %v20
    %v191 = vmul.f32 %v21, %v21
    %v192 = vmul.f32 %v22, %v22
    %v193 = vsel %vm31, %v185, 0.0
    %194 = vadd.xlane.f32.xlu0 %v193
    %v195 = vpop.xlane.xlu0 %194
    %v196 = vsel %vm31, %v186, 0.0
    %197 = vadd.xlane.f32.xlu0 %v196
    %v198 = vpop.xlane.xlu0 %197
    %v199 = vsel %vm31, %v187, 0.0
    %200 = vadd.xlane.f32.xlu0 %v199
    %v201 = vpop.xlane.xlu0 %200
    %v202 = vsel %vm31, %v188, 0.0
    %203 = vadd.xlane.f32.xlu0 %v202
    %v204 = vpop.xlane.xlu0 %203
    %v205 = vsel %vm31, %v189, 0.0
    %206 = vadd.xlane.f32.xlu0 %v205
    %v207 = vpop.xlane.xlu0 %206
    %v208 = vsel %vm31, %v190, 0.0
    %209 = vadd.xlane.f32.xlu0 %v208
    %v210 = vpop.xlane.xlu0 %209
    %v211 = vsel %vm31, %v191, 0.0
    %212 = vadd.xlane.f32.xlu0 %v211
    %v213 = vpop.xlane.xlu0 %212
    %v214 = vsel %vm31, %v192, 0.0
    %215 = vadd.xlane.f32.xlu0 %v214
    %v216 = vpop.xlane.xlu0 %215
    %v217 = vld [vmem:[%s2] sm:$0x1]
    %v219 = vlaneseq
    %v220 = vshrl.u32 %v219, 7
    %v221 = vsub.s32 0, %v220
    %v222 = vrot.slane %v217, %v221
    %v224 = vadd.f32 %v195, %v222
    %v225 = vadd.f32 %v198, %v222
    %v226 = vadd.f32 %v201, %v222
    %v227 = vadd.f32 %v204, %v222
    %v228 = vadd.f32 %v207, %v222
    %v229 = vadd.f32 %v210, %v222
    %v230 = vadd.f32 %v213, %v222
    %v231 = vadd.f32 %v216, %v222
    %v232 = vmul.f32 %v147, 2.0
    %v233 = vmul.f32 %v152, 2.0
    %v234 = vmul.f32 %v157, 2.0
    %v235 = vmul.f32 %v162, 2.0
    %v236 = vmul.f32 %v167, 2.0
    %v237 = vmul.f32 %v172, 2.0
    %v238 = vmul.f32 %v177, 2.0
    %v239 = vmul.f32 %v182, 2.0
    %v240 = vsub.f32 %v224, %v232
    %v241 = vsub.f32 %v225, %v233
    %v242 = vsub.f32 %v226, %v234
    %v243 = vsub.f32 %v227, %v235
    %v244 = vsub.f32 %v228, %v236
    %v245 = vsub.f32 %v229, %v237
    %v246 = vsub.f32 %v230, %v238
    %v247 = vsub.f32 %v231, %v239
    %v248 = vmax.f32 %v240, 0.0
    %v249 = vmax.f32 %v241, 0.0
    %v250 = vmax.f32 %v242, 0.0
    %v251 = vmax.f32 %v243, 0.0
    %v252 = vmax.f32 %v244, 0.0
    %v253 = vmax.f32 %v245, 0.0
    %v254 = vmax.f32 %v246, 0.0
    %v255 = vmax.f32 %v247, 0.0
    %vm256 = vcmask 523264
    %257 = vst.msk [vmem:[#allocation2] sm:$0xff] %vm256, %v248
    %258 = vst.msk [vmem:[#allocation2 + $0x8] sm:$0xff] %vm256, %v249
    %259 = vst.msk [vmem:[#allocation2 + $0x10] sm:$0xff] %vm256, %v250
    %260 = vst.msk [vmem:[#allocation2 + $0x18] sm:$0xff] %vm256, %v251
    %261 = vst.msk [vmem:[#allocation2 + $0x20] sm:$0xff] %vm256, %v252
    %262 = vst.msk [vmem:[#allocation2 + $0x28] sm:$0xff] %vm256, %v253
    %263 = vst.msk [vmem:[#allocation2 + $0x30] sm:$0xff] %vm256, %v254
    %264 = vst.msk [vmem:[#allocation2 + $0x38] sm:$0xff] %vm256, %v255
    // Predicated region
    $region14: #{tpu_custom_call.1} parent=1 // pred_check
      _
    $region15: #{tpu_custom_call.1} parent=1 // pred_check_branch
      %266 = sbr.rel (0) target = $region17
    $region16: #{tpu_custom_call.1} parent=1 // pred_region
      %s268 = ssub.s32 1024, 1024
      %269 = vsyncadd [#allocation3], %s268
      %s270 = sshll.u32 [#allocation2], 4
      %s271 = int_to_ptr.vmem [resolvable:$true] %s270
      %276 = dma.vmem_to_hbm [thread:$0]  %s271, 1024, %s3, [#allocation3], 128, 128, 8
    $region17: #{tpu_custom_call.1} parent=1 // pred_fallthru
      _
    // Predicated region
    $region18: #{tpu_custom_call.1} parent=1 // pred_check
      _
    $region19: #{tpu_custom_call.1} parent=1 // pred_check_branch
      %278 = sbr.rel (0) target = $region21
    $region20: #{tpu_custom_call.1} parent=1 // pred_region
      %279 = dma.done [#allocation3], 1024
    $region21: #{tpu_custom_call.1} parent=1 // pred_fallthru
      _
    %280 = vsyncpa [#allocation3], 1

</llo_original>
